<compile_context>
chip_gen: v7x
topology: tpu7x:2x2x1
jax: 0.10.0
libtpu: 0.0.40
codegen_flags: <defaults>
</compile_context>

<pallas_src>
import jax
import jax.numpy as jnp
from jax.experimental import pallas as pl
from jax.experimental.pallas import tpu as pltpu


def _vmem_capacity_bytes():
    """Physical VMEM per TensorCore; conservative fallback = 64 MiB (v7x)."""
    try:
        info = pltpu.get_tpu_info()
        cap = getattr(info, "vmem_capacity_bytes", None)
        if cap:
            return int(cap)
    except Exception:
        pass
    return 64 * 2**20


def _pool_matrix_small(W, dtype=jnp.bfloat16):
    """(2W, Wo) matrix mapping one flattened input row-pair to one pooled
    output row; each output column averages its 2x2 window (0.25 folded in).
    0.25 is exact in bf16."""
    Wo = W // 2
    rows = jnp.arange(2 * W)
    cols = jnp.arange(Wo)
    hit = ((rows % W) // 2)[:, None] == cols[None, :]
    return jnp.where(hit, 0.25, 0.0).astype(dtype)


def _pick_row_tile(Ho, Wo, W, Cin, Cout, itemsize, budget, n_batch,
                   max_unroll=64):
    """Largest th dividing Ho whose blocks are (8,128)-legal and fit the VMEM
    budget.  th == Ho (full extent blocks) is always legal; prefer R >= 2 when
    N == 1 so both v7x TensorCores get grid work."""
    def legal(t):
        return (t * Wo) % 128 == 0 or t == Ho

    def need_bytes(t):
        lx, ly = t * 2 * W, t * Wo
        blocks = Cin * lx * itemsize + Cout * ly * itemsize      # x in, y out
        params = 2 * Cin * 4 + Cout * Cin * 2 + 2 * W * Wo * 2   # scale/bias/w/pool
        scratch = Cin * ly * 2                                   # bf16 pooled
        live = Cout * ly * 4 + Cin * 2 * W * 4 * 2               # f32 conv out + temps
        return 2 * (blocks + params) + scratch + live            # double-buffered

    cands = [t for t in range(1, Ho + 1) if Ho % t == 0 and legal(t)]
    if not cands:
        cands = [Ho]
    fits = [t for t in cands if t <= max_unroll and need_bytes(t) <= budget]
    if not fits:
        fits = [min(cands)]
    fits.sort(reverse=True)
    if n_batch == 1:
        pref = [t for t in fits if Ho // t >= 2]
        if pref:
            return pref[0], need_bytes(pref[0])
    return fits[0], need_bytes(fits[0])


def _make_kernel(th, W, cin):
    two_w = 2 * W
    Wo = W // 2

    def kernel(x_ref, scale_ref, bias_ref, w_ref, p_ref, o_ref, pool_scr):
        # x_ref:     (1, Cin, th*2W)  NCHW rows, spatial flattened onto lanes
        # scale_ref: (Cin, 1) f32     folded BN scale  (gamma / sqrt(var+eps))
        # bias_ref:  (Cin, 1) f32     folded BN bias   (beta - mean * scale)
        # w_ref:     (Cout, Cin) bf16 1x1 conv weight
        # p_ref:     (2W, Wo) bf16    per-row-pair 2x2 avg-pool matrix (0.25)
        # o_ref:     (1, Cout, th*Wo) lane-dense NC(HoWo) output block
        # pool_scr:  (Cin, th*Wo) bf16 VMEM scratch (pooled activations)
        scale_b = jnp.broadcast_to(scale_ref[...], (cin, two_w))  # hoisted
        bias_b = jnp.broadcast_to(bias_ref[...], (cin, two_w))
        pmat = p_ref[...]

        # Per output-row group: BN + ReLU (VPU) then 2x2 avg-pool as one small
        # MXU matmul against the resident (2W, Wo) matrix.
        for g in range(th):
            xg = x_ref[0, :, g * two_w:(g + 1) * two_w]           # (Cin, 2W)
            hg = jnp.maximum(xg * scale_b + bias_b, 0.0)
            pg = jnp.dot(hg.astype(jnp.bfloat16), pmat,
                         preferred_element_type=jnp.float32)      # (Cin, Wo)
            pool_scr[:, g * Wo:(g + 1) * Wo] = pg.astype(jnp.bfloat16)

        # 1x1 conv at quarter resolution: one lane-dense bf16 MXU matmul.
        y = jnp.dot(w_ref[...], pool_scr[...],
                    preferred_element_type=jnp.float32)           # (Cout, Ly)
        o_ref[0] = y.astype(o_ref.dtype)

    return kernel


def transition_layer(x_nchw, gamma, beta, running_mean, running_var,
                     conv_weight, eps=1e-5):
    """Pallas implementation of TransitionLayer.forward (inference-mode BN)."""
    N, Cin, H, W = x_nchw.shape
    Cout = conv_weight.shape[0]
    assert H % 2 == 0 and W % 2 == 0
    Ho, Wo = H // 2, W // 2
    S, So = H * W, Ho * Wo

    # --- glue (metadata-only / tiny): stay NCHW end to end ------------------
    x_flat = x_nchw.reshape(N, Cin, S)                            # free reshape
    inv_std = jax.lax.rsqrt(running_var.astype(jnp.float32) + eps)
    g32 = gamma.astype(jnp.float32)
    scale = (g32 * inv_std).reshape(Cin, 1)
    bias = (beta.astype(jnp.float32)
            - running_mean.astype(jnp.float32) * g32 * inv_std).reshape(Cin, 1)
    w_bf16 = conv_weight[:, :, 0, 0].astype(jnp.bfloat16)         # (Cout, Cin)
    pool_small = _pool_matrix_small(W)                            # (2W, Wo) bf16

    itemsize = jnp.dtype(x_nchw.dtype).itemsize
    cap = _vmem_capacity_bytes()
    tile_budget = int(0.6 * cap)
    th, need = _pick_row_tile(Ho, Wo, W, Cin, Cout, itemsize, tile_budget, N)
    R = Ho // th
    Lx, Ly = th * 2 * W, th * Wo
    vmem_limit = int(min(0.9 * cap, max(0.75 * cap, 1.3 * need)))

    kernel = _make_kernel(th, W, Cin)

    out_flat = pl.pallas_call(
        kernel,
        out_shape=jax.ShapeDtypeStruct((N, Cout, So), x_nchw.dtype),
        grid_spec=pltpu.PrefetchScalarGridSpec(
            num_scalar_prefetch=0,
            grid=(N, R),
            in_specs=[
                pl.BlockSpec((1, Cin, Lx), lambda n, r: (n, 0, r)),
                pl.BlockSpec((Cin, 1), lambda n, r: (0, 0)),
                pl.BlockSpec((Cin, 1), lambda n, r: (0, 0)),
                pl.BlockSpec((Cout, Cin), lambda n, r: (0, 0)),
                pl.BlockSpec((2 * W, Wo), lambda n, r: (0, 0)),
            ],
            out_specs=pl.BlockSpec((1, Cout, Ly), lambda n, r: (n, 0, r)),
            scratch_shapes=[pltpu.VMEM((Cin, Ly), jnp.bfloat16)],
        ),
        compiler_params=pltpu.CompilerParams(
            dimension_semantics=("parallel", "parallel"),
            vmem_limit_bytes=vmem_limit,
        ),
    )(x_flat, scale, bias, w_bf16, pool_small)

    return out_flat.reshape(N, Cout, Ho, Wo)                      # free reshape


def _reference(x_nchw, gamma, beta, rm, rv, conv_weight, eps=1e-5):
    """Plain-JAX reference (matches PyTorch eval-mode forward)."""
    xh = (x_nchw - rm[None, :, None, None]) * jax.lax.rsqrt(
        rv[None, :, None, None] + eps)
    xh = xh * gamma[None, :, None, None] + beta[None, :, None, None]
    xh = jnp.maximum(xh, 0.0)
    y = jnp.einsum('nchw,oc->nohw', xh, conv_weight[:, :, 0, 0])
    N, Co, H, W = y.shape
    return y.reshape(N, Co, H // 2, 2, W // 2, 2).mean(axis=(3, 5))


if __name__ == "__main__":
    N, Cin, H, W = 2, 8, 16, 16
    Cout = 4

    key = jax.random.PRNGKey(0)
    kx, kg, kb, km, kv, kw = jax.random.split(key, 6)

    x = jax.random.normal(kx, (N, Cin, H, W), dtype=jnp.float32)
    gamma = jax.random.normal(kg, (Cin,), dtype=jnp.float32) * 0.1 + 1.0
    beta = jax.random.normal(kb, (Cin,), dtype=jnp.float32) * 0.1
    running_mean = jax.random.normal(km, (Cin,), dtype=jnp.float32) * 0.1
    running_var = jnp.abs(jax.random.normal(kv, (Cin,), dtype=jnp.float32)) + 0.5
    conv_weight = jax.random.normal(kw, (Cout, Cin, 1, 1), dtype=jnp.float32) * 0.1

    out = transition_layer(x, gamma, beta, running_mean, running_var,
                           conv_weight)
    out = jax.block_until_ready(out)

    ref = _reference(x, gamma, beta, running_mean, running_var, conv_weight)
    assert out.shape == (N, Cout, H // 2, W // 2), out.shape
    err = float(jnp.max(jnp.abs(out - ref)))
    # bf16 MXU operands with f32 accumulation: ~1e-3 relative drift expected.
    assert err < 1e-2, err

    print("KERNEL_OK")
</pallas_src>

<mosaic_0001>
module attributes {stable_mosaic.version = 11 : i64} {
  func.func @kernel(%arg0: i32, %arg1: i32, %arg2: memref<1x8x256xf32, #tpu.memory_space<vmem>>, %arg3: memref<8x1xf32, #tpu.memory_space<vmem>>, %arg4: memref<8x1xf32, #tpu.memory_space<vmem>>, %arg5: memref<4x8xbf16, #tpu.memory_space<vmem>>, %arg6: memref<32x8xbf16, #tpu.memory_space<vmem>>, %arg7: memref<1x4x64xf32, #tpu.memory_space<vmem>>, %arg8: memref<8x64xbf16, #tpu.memory_space<vmem>>) attributes {dimension_semantics = [#tpu.dimension_semantics<parallel>, #tpu.dimension_semantics<parallel>], iteration_bounds = array<i64: 2, 1>, scalar_prefetch = 0 : i64, scratch_operands = 1 : i64, tpu.core_type = #tpu.core_type<tc>, window_params = [{transform_indices = @transform_0, window_bounds = array<i64: 1, 8, 256>}, {pipeline_mode = #tpu.pipeline_mode<synchronous>, transform_indices = @transform_1, window_bounds = array<i64: 8, 1>}, {pipeline_mode = #tpu.pipeline_mode<synchronous>, transform_indices = @transform_2, window_bounds = array<i64: 8, 1>}, {pipeline_mode = #tpu.pipeline_mode<synchronous>, transform_indices = @transform_3, window_bounds = array<i64: 4, 8>}, {pipeline_mode = #tpu.pipeline_mode<synchronous>, transform_indices = @transform_4, window_bounds = array<i64: 32, 8>}, {transform_indices = @transform_5, window_bounds = array<i64: 1, 4, 64>}]} {
    %c0 = arith.constant 0 : index
    %c0_0 = arith.constant 0 : index
    %0 = vector.load %arg3[%c0, %c0_0] : memref<8x1xf32, #tpu.memory_space<vmem>>, vector<8x1xf32>
    %1 = vector.shape_cast %0 : vector<8x1xf32> to vector<8x1xf32>
    %2 = vector.broadcast %1 : vector<8x1xf32> to vector<8x32xf32>
    %c0_1 = arith.constant 0 : index
    %c0_2 = arith.constant 0 : index
    %3 = vector.load %arg4[%c0_1, %c0_2] : memref<8x1xf32, #tpu.memory_space<vmem>>, vector<8x1xf32>
    %4 = vector.shape_cast %3 : vector<8x1xf32> to vector<8x1xf32>
    %5 = vector.broadcast %4 : vector<8x1xf32> to vector<8x32xf32>
    %c0_3 = arith.constant 0 : index
    %c0_4 = arith.constant 0 : index
    %6 = vector.load %arg6[%c0_3, %c0_4] : memref<32x8xbf16, #tpu.memory_space<vmem>>, vector<32x8xbf16>
    %c0_5 = arith.constant 0 : index
    %c0_6 = arith.constant 0 : index
    %c0_7 = arith.constant 0 : index
    %7 = vector.load %arg2[%c0_5, %c0_6, %c0_7] : memref<1x8x256xf32, #tpu.memory_space<vmem>>, vector<1x8x32xf32>
    %8 = vector.shape_cast %7 : vector<1x8x32xf32> to vector<8x32xf32>
    %9 = arith.mulf %8, %2 : vector<8x32xf32>
    %10 = arith.addf %9, %5 : vector<8x32xf32>
    %cst = arith.constant 0.000000e+00 : f32
    %11 = vector.broadcast %cst : f32 to vector<8x32xf32>
    %12 = arith.maximumf %10, %11 : vector<8x32xf32>
    %13 = arith.truncf %12 : vector<8x32xf32> to vector<8x32xbf16>
    %cst_8 = arith.constant dense<0.000000e+00> : vector<8x8xf32>
    %14 = tpu.matmul %13, %6, %cst_8 {dimension_numbers = #tpu.dot_dimension_numbers<[1], [0], [0], [1], [0, 0, 1, 1], [], []>} : vector<8x32xbf16>, vector<32x8xbf16>, vector<8x8xf32> -> vector<8x8xf32>
    %15 = arith.truncf %14 : vector<8x8xf32> to vector<8x8xbf16>
    %c0_9 = arith.constant 0 : index
    %c0_10 = arith.constant 0 : index
    %16 = vector.load %arg8[%c0_9, %c0_10] : memref<8x64xbf16, #tpu.memory_space<vmem>>, vector<8x8xbf16>
    tpu.vector_store %arg8[%c0_9, %c0_10], %15 {strides = array<i32>} : memref<8x64xbf16, #tpu.memory_space<vmem>>, vector<8x8xbf16>,
    %c0_11 = arith.constant 0 : index
    %c0_12 = arith.constant 0 : index
    %c32 = arith.constant 32 : index
    %17 = vector.load %arg2[%c0_11, %c0_12, %c32] : memref<1x8x256xf32, #tpu.memory_space<vmem>>, vector<1x8x32xf32>
    %18 = vector.shape_cast %17 : vector<1x8x32xf32> to vector<8x32xf32>
    %19 = arith.mulf %18, %2 : vector<8x32xf32>
    %20 = arith.addf %19, %5 : vector<8x32xf32>
    %cst_13 = arith.constant 0.000000e+00 : f32
    %21 = vector.broadcast %cst_13 : f32 to vector<8x32xf32>
    %22 = arith.maximumf %20, %21 : vector<8x32xf32>
    %23 = arith.truncf %22 : vector<8x32xf32> to vector<8x32xbf16>
    %cst_14 = arith.constant dense<0.000000e+00> : vector<8x8xf32>
    %24 = tpu.matmul %23, %6, %cst_14 {dimension_numbers = #tpu.dot_dimension_numbers<[1], [0], [0], [1], [0, 0, 1, 1], [], []>} : vector<8x32xbf16>, vector<32x8xbf16>, vector<8x8xf32> -> vector<8x8xf32>
    %25 = arith.truncf %24 : vector<8x8xf32> to vector<8x8xbf16>
    %c0_15 = arith.constant 0 : index
    %c8 = arith.constant 8 : index
    %26 = vector.load %arg8[%c0_15, %c8] : memref<8x64xbf16, #tpu.memory_space<vmem>>, vector<8x8xbf16>
    tpu.vector_store %arg8[%c0_15, %c8], %25 {strides = array<i32>} : memref<8x64xbf16, #tpu.memory_space<vmem>>, vector<8x8xbf16>,
    %c0_16 = arith.constant 0 : index
    %c0_17 = arith.constant 0 : index
    %c64 = arith.constant 64 : index
    %27 = vector.load %arg2[%c0_16, %c0_17, %c64] : memref<1x8x256xf32, #tpu.memory_space<vmem>>, vector<1x8x32xf32>
    %28 = vector.shape_cast %27 : vector<1x8x32xf32> to vector<8x32xf32>
    %29 = arith.mulf %28, %2 : vector<8x32xf32>
    %30 = arith.addf %29, %5 : vector<8x32xf32>
    %cst_18 = arith.constant 0.000000e+00 : f32
    %31 = vector.broadcast %cst_18 : f32 to vector<8x32xf32>
    %32 = arith.maximumf %30, %31 : vector<8x32xf32>
    %33 = arith.truncf %32 : vector<8x32xf32> to vector<8x32xbf16>
    %cst_19 = arith.constant dense<0.000000e+00> : vector<8x8xf32>
    %34 = tpu.matmul %33, %6, %cst_19 {dimension_numbers = #tpu.dot_dimension_numbers<[1], [0], [0], [1], [0, 0, 1, 1], [], []>} : vector<8x32xbf16>, vector<32x8xbf16>, vector<8x8xf32> -> vector<8x8xf32>
    %35 = arith.truncf %34 : vector<8x8xf32> to vector<8x8xbf16>
    %c0_20 = arith.constant 0 : index
    %c16 = arith.constant 16 : index
    %36 = vector.load %arg8[%c0_20, %c16] : memref<8x64xbf16, #tpu.memory_space<vmem>>, vector<8x8xbf16>
    tpu.vector_store %arg8[%c0_20, %c16], %35 {strides = array<i32>} : memref<8x64xbf16, #tpu.memory_space<vmem>>, vector<8x8xbf16>,
    %c0_21 = arith.constant 0 : index
    %c0_22 = arith.constant 0 : index
    %c96 = arith.constant 96 : index
    %37 = vector.load %arg2[%c0_21, %c0_22, %c96] : memref<1x8x256xf32, #tpu.memory_space<vmem>>, vector<1x8x32xf32>
    %38 = vector.shape_cast %37 : vector<1x8x32xf32> to vector<8x32xf32>
    %39 = arith.mulf %38, %2 : vector<8x32xf32>
    %40 = arith.addf %39, %5 : vector<8x32xf32>
    %cst_23 = arith.constant 0.000000e+00 : f32
    %41 = vector.broadcast %cst_23 : f32 to vector<8x32xf32>
    %42 = arith.maximumf %40, %41 : vector<8x32xf32>
    %43 = arith.truncf %42 : vector<8x32xf32> to vector<8x32xbf16>
    %cst_24 = arith.constant dense<0.000000e+00> : vector<8x8xf32>
    %44 = tpu.matmul %43, %6, %cst_24 {dimension_numbers = #tpu.dot_dimension_numbers<[1], [0], [0], [1], [0, 0, 1, 1], [], []>} : vector<8x32xbf16>, vector<32x8xbf16>, vector<8x8xf32> -> vector<8x8xf32>
    %45 = arith.truncf %44 : vector<8x8xf32> to vector<8x8xbf16>
    %c0_25 = arith.constant 0 : index
    %c24 = arith.constant 24 : index
    %46 = vector.load %arg8[%c0_25, %c24] : memref<8x64xbf16, #tpu.memory_space<vmem>>, vector<8x8xbf16>
    tpu.vector_store %arg8[%c0_25, %c24], %45 {strides = array<i32>} : memref<8x64xbf16, #tpu.memory_space<vmem>>, vector<8x8xbf16>,
    %c0_26 = arith.constant 0 : index
    %c0_27 = arith.constant 0 : index
    %c128 = arith.constant 128 : index
    %47 = vector.load %arg2[%c0_26, %c0_27, %c128] : memref<1x8x256xf32, #tpu.memory_space<vmem>>, vector<1x8x32xf32>
    %48 = vector.shape_cast %47 : vector<1x8x32xf32> to vector<8x32xf32>
    %49 = arith.mulf %48, %2 : vector<8x32xf32>
    %50 = arith.addf %49, %5 : vector<8x32xf32>
    %cst_28 = arith.constant 0.000000e+00 : f32
    %51 = vector.broadcast %cst_28 : f32 to vector<8x32xf32>
    %52 = arith.maximumf %50, %51 : vector<8x32xf32>
    %53 = arith.truncf %52 : vector<8x32xf32> to vector<8x32xbf16>
    %cst_29 = arith.constant dense<0.000000e+00> : vector<8x8xf32>
    %54 = tpu.matmul %53, %6, %cst_29 {dimension_numbers = #tpu.dot_dimension_numbers<[1], [0], [0], [1], [0, 0, 1, 1], [], []>} : vector<8x32xbf16>, vector<32x8xbf16>, vector<8x8xf32> -> vector<8x8xf32>
    %55 = arith.truncf %54 : vector<8x8xf32> to vector<8x8xbf16>
    %c0_30 = arith.constant 0 : index
    %c32_31 = arith.constant 32 : index
    %56 = vector.load %arg8[%c0_30, %c32_31] : memref<8x64xbf16, #tpu.memory_space<vmem>>, vector<8x8xbf16>
    tpu.vector_store %arg8[%c0_30, %c32_31], %55 {strides = array<i32>} : memref<8x64xbf16, #tpu.memory_space<vmem>>, vector<8x8xbf16>,
    %c0_32 = arith.constant 0 : index
    %c0_33 = arith.constant 0 : index
    %c160 = arith.constant 160 : index
    %57 = vector.load %arg2[%c0_32, %c0_33, %c160] : memref<1x8x256xf32, #tpu.memory_space<vmem>>, vector<1x8x32xf32>
    %58 = vector.shape_cast %57 : vector<1x8x32xf32> to vector<8x32xf32>
    %59 = arith.mulf %58, %2 : vector<8x32xf32>
    %60 = arith.addf %59, %5 : vector<8x32xf32>
    %cst_34 = arith.constant 0.000000e+00 : f32
    %61 = vector.broadcast %cst_34 : f32 to vector<8x32xf32>
    %62 = arith.maximumf %60, %61 : vector<8x32xf32>
    %63 = arith.truncf %62 : vector<8x32xf32> to vector<8x32xbf16>
    %cst_35 = arith.constant dense<0.000000e+00> : vector<8x8xf32>
    %64 = tpu.matmul %63, %6, %cst_35 {dimension_numbers = #tpu.dot_dimension_numbers<[1], [0], [0], [1], [0, 0, 1, 1], [], []>} : vector<8x32xbf16>, vector<32x8xbf16>, vector<8x8xf32> -> vector<8x8xf32>
    %65 = arith.truncf %64 : vector<8x8xf32> to vector<8x8xbf16>
    %c0_36 = arith.constant 0 : index
    %c40 = arith.constant 40 : index
    %66 = vector.load %arg8[%c0_36, %c40] : memref<8x64xbf16, #tpu.memory_space<vmem>>, vector<8x8xbf16>
    tpu.vector_store %arg8[%c0_36, %c40], %65 {strides = array<i32>} : memref<8x64xbf16, #tpu.memory_space<vmem>>, vector<8x8xbf16>,
    %c0_37 = arith.constant 0 : index
    %c0_38 = arith.constant 0 : index
    %c192 = arith.constant 192 : index
    %67 = vector.load %arg2[%c0_37, %c0_38, %c192] : memref<1x8x256xf32, #tpu.memory_space<vmem>>, vector<1x8x32xf32>
    %68 = vector.shape_cast %67 : vector<1x8x32xf32> to vector<8x32xf32>
    %69 = arith.mulf %68, %2 : vector<8x32xf32>
    %70 = arith.addf %69, %5 : vector<8x32xf32>
    %cst_39 = arith.constant 0.000000e+00 : f32
    %71 = vector.broadcast %cst_39 : f32 to vector<8x32xf32>
    %72 = arith.maximumf %70, %71 : vector<8x32xf32>
    %73 = arith.truncf %72 : vector<8x32xf32> to vector<8x32xbf16>
    %cst_40 = arith.constant dense<0.000000e+00> : vector<8x8xf32>
    %74 = tpu.matmul %73, %6, %cst_40 {dimension_numbers = #tpu.dot_dimension_numbers<[1], [0], [0], [1], [0, 0, 1, 1], [], []>} : vector<8x32xbf16>, vector<32x8xbf16>, vector<8x8xf32> -> vector<8x8xf32>
    %75 = arith.truncf %74 : vector<8x8xf32> to vector<8x8xbf16>
    %c0_41 = arith.constant 0 : index
    %c48 = arith.constant 48 : index
    %76 = vector.load %arg8[%c0_41, %c48] : memref<8x64xbf16, #tpu.memory_space<vmem>>, vector<8x8xbf16>
    tpu.vector_store %arg8[%c0_41, %c48], %75 {strides = array<i32>} : memref<8x64xbf16, #tpu.memory_space<vmem>>, vector<8x8xbf16>,
    %c0_42 = arith.constant 0 : index
    %c0_43 = arith.constant 0 : index
    %c224 = arith.constant 224 : index
    %77 = vector.load %arg2[%c0_42, %c0_43, %c224] : memref<1x8x256xf32, #tpu.memory_space<vmem>>, vector<1x8x32xf32>
    %78 = vector.shape_cast %77 : vector<1x8x32xf32> to vector<8x32xf32>
    %79 = arith.mulf %78, %2 : vector<8x32xf32>
    %80 = arith.addf %79, %5 : vector<8x32xf32>
    %cst_44 = arith.constant 0.000000e+00 : f32
    %81 = vector.broadcast %cst_44 : f32 to vector<8x32xf32>
    %82 = arith.maximumf %80, %81 : vector<8x32xf32>
    %83 = arith.truncf %82 : vector<8x32xf32> to vector<8x32xbf16>
    %cst_45 = arith.constant dense<0.000000e+00> : vector<8x8xf32>
    %84 = tpu.matmul %83, %6, %cst_45 {dimension_numbers = #tpu.dot_dimension_numbers<[1], [0], [0], [1], [0, 0, 1, 1], [], []>} : vector<8x32xbf16>, vector<32x8xbf16>, vector<8x8xf32> -> vector<8x8xf32>
    %85 = arith.truncf %84 : vector<8x8xf32> to vector<8x8xbf16>
    %c0_46 = arith.constant 0 : index
    %c56 = arith.constant 56 : index
    %86 = vector.load %arg8[%c0_46, %c56] : memref<8x64xbf16, #tpu.memory_space<vmem>>, vector<8x8xbf16>
    tpu.vector_store %arg8[%c0_46, %c56], %85 {strides = array<i32>} : memref<8x64xbf16, #tpu.memory_space<vmem>>, vector<8x8xbf16>,
    %c0_47 = arith.constant 0 : index
    %c0_48 = arith.constant 0 : index
    %87 = vector.load %arg5[%c0_47, %c0_48] : memref<4x8xbf16, #tpu.memory_space<vmem>>, vector<4x8xbf16>
    %c0_49 = arith.constant 0 : index
    %c0_50 = arith.constant 0 : index
    %88 = vector.load %arg8[%c0_49, %c0_50] : memref<8x64xbf16, #tpu.memory_space<vmem>>, vector<8x64xbf16>
    %cst_51 = arith.constant dense<0.000000e+00> : vector<4x64xf32>
    %89 = tpu.matmul %87, %88, %cst_51 {dimension_numbers = #tpu.dot_dimension_numbers<[1], [0], [0], [1], [0, 0, 1, 1], [], []>} : vector<4x8xbf16>, vector<8x64xbf16>, vector<4x64xf32> -> vector<4x64xf32>
    %c0_52 = arith.constant 0 : index
    %c0_53 = arith.constant 0 : index
    %c0_54 = arith.constant 0 : index
    %90 = vector.load %arg7[%c0_52, %c0_53, %c0_54] : memref<1x4x64xf32, #tpu.memory_space<vmem>>, vector<1x4x64xf32>
    %91 = vector.shape_cast %90 : vector<1x4x64xf32> to vector<4x64xf32>
    %92 = vector.shape_cast %89 : vector<4x64xf32> to vector<1x4x64xf32>
    tpu.vector_store %arg7[%c0_52, %c0_53, %c0_54], %92 {strides = array<i32>} : memref<1x4x64xf32, #tpu.memory_space<vmem>>, vector<1x4x64xf32>,
    return
  }
  func.func @transform_0(%arg0: i32, %arg1: i32) -> (i32, i32, i32) {
    %c0_i32 = arith.constant 0 : i32
    %c0_i32_0 = arith.constant 0 : i32
    return %arg0, %c0_i32, %arg1 : i32, i32, i32
  }
  func.func @transform_1(%arg0: i32, %arg1: i32) -> (i32, i32) {
    %c0_i32 = arith.constant 0 : i32
    %c0_i32_0 = arith.constant 0 : i32
    %c0_i32_1 = arith.constant 0 : i32
    return %c0_i32, %c0_i32_0 : i32, i32
  }
  func.func @transform_2(%arg0: i32, %arg1: i32) -> (i32, i32) {
    %c0_i32 = arith.constant 0 : i32
    %c0_i32_0 = arith.constant 0 : i32
    %c0_i32_1 = arith.constant 0 : i32
    return %c0_i32, %c0_i32_0 : i32, i32
  }
  func.func @transform_3(%arg0: i32, %arg1: i32) -> (i32, i32) {
    %c0_i32 = arith.constant 0 : i32
    %c0_i32_0 = arith.constant 0 : i32
    %c0_i32_1 = arith.constant 0 : i32
    return %c0_i32, %c0_i32_0 : i32, i32
  }
  func.func @transform_4(%arg0: i32, %arg1: i32) -> (i32, i32) {
    %c0_i32 = arith.constant 0 : i32
    %c0_i32_0 = arith.constant 0 : i32
    %c0_i32_1 = arith.constant 0 : i32
    return %c0_i32, %c0_i32_0 : i32, i32
  }
  func.func @transform_5(%arg0: i32, %arg1: i32) -> (i32, i32, i32) {
    %c0_i32 = arith.constant 0 : i32
    %c0_i32_0 = arith.constant 0 : i32
    return %arg0, %c0_i32, %arg1 : i32, i32, i32
  }
}

</mosaic_0001>

<llo_original>
// kernel: tpu_custom_call.1
$region0: #{tpu_custom_call.1}
  #allocation0 [shape = 'u32[]', space=smem, size = 0x4, offset = 0x4, fixed_abs, tag = 'smem constant byte address 0x4 - core index']
  #allocation1 [shape = 'u32[144,128]{1,0:T(1,128)}', space=vmem, size = 0x12000, scoped, tag = 'internal scratch']
  #allocation2 [shape = 'bf16[8,64]{1,0:T(8,128)(2,1)}', space=vmem, size = 0x800, scoped, tag = 'scratch operand']
  %s0 = inlined_call_operand.vmem [shape: f32[2,8,256], index: 0, kind: input, shape index: {}]
  %s1 = inlined_call_operand.vmem [shape: f32[8,1], index: 1, kind: input, shape index: {}]
  %s2 = inlined_call_operand.vmem [shape: f32[8,1], index: 2, kind: input, shape index: {}]
  %s3 = inlined_call_operand.vmem [shape: bf16[4,8], index: 3, kind: input, shape index: {}]
  %s4 = inlined_call_operand.vmem [shape: bf16[32,8], index: 4, kind: input, shape index: {}]
  %s5 = inlined_call_operand.hbm [shape: f32[2,4,64], index: 5, kind: output, shape index: {}]
  %s6 = sld [smem:[#allocation0]]
  $region53: #{tpu_custom_call.1} parent=0
    _
  %s8 = ssub.s32 1, %s6
  %s9 = scalar_select 0, %s8, %s6
  $region1: #{tpu_custom_call.1} parent=0
    #allocation3 [shape = 'u8[4096]{0}', space=vmem, size = 0x1000, scoped, tag = 'output window, operand 0']
    #allocation4 [shape = 's32[2]{0}', space=sflag, size = 0x8, scoped, tag = 'scoped memory for tpu_custom_call.1']
    %10 = vsyncpa [#allocation4], 0
    %s11 = scalar_lea.sflag [#allocation4], 1
    %12 = vsyncpa %s11, 0
    loop: start=0, step=1, limit=4
    $region2: #{tpu_custom_call.1} parent=1 // loop_pre_header
      _
    $region3: #{tpu_custom_call.1} parent=1 // loop_header
      %s14 = sphi 0, %s18
      %p15 = scmp.ge.s32.totalorder %s14, 4
      %s21 = sphi 0, %s33
      %s22 = sphi 0, %s29
      %s23 = sphi 0, %s21
      %s24 = sphi 0, %s22
      %s25 = sphi 0, %s23
      %s26 = sphi 0, %s24
      %s38 = sphi 0, %s40
      %s41 = sphi 0, %s38
      %s42 = sphi 0, %s41
      %s58 = sphi 0, %s42
      %s62 = sphi 0, %s62
      %s64 = sphi 0, %s62
      %s65 = sphi 0, %s64
      %s79 = sphi 0, %s65
      %s83 = sphi 0, %s83
      %s85 = sphi 0, %s83
      %s86 = sphi 0, %s85
      %s100 = sphi 0, %s86
      %s104 = sphi 0, %s104
      %s106 = sphi 0, %s104
      %s107 = sphi 0, %s106
      %s121 = sphi 0, %s107
      %s125 = sphi 0, %s125
      %s127 = sphi 0, %s125
      %s128 = sphi 0, %s127
      %s142 = sphi 0, %s128
      %s150 = sphi 0, %s152
      %s153 = sphi 0, %s150
      %s154 = sphi 0, %s153
      %s170 = sphi 0, %s154
    $region4: #{tpu_custom_call.1} parent=1 // loop_header_branch
      %17 = sbr.rel (%p15) target = $region8
    $region5: #{tpu_custom_call.1} parent=1 // loop_body
      %s19 = ssub.s32 %s14, 1
      %s20 = ssub.s32 %s14, 2
      %s27 = sadd.s32 1, %s22
      %p28 = scmp.ge.s32.totalorder %s27, 1
      %s29 = scalar_select %p28, 0, %s27
      %s30 = sadd.s32 1, %s21
      %s31 = scalar_select %p28, %s30, %s21
      %p32 = scmp.ge.s32.totalorder %s31, 2
      %s33 = scalar_select %p32, 0, %s31
      %s34 = ssub.s32 %s21, %s33
      %s35 = ssub.s32 %s22, %s29
      %s36 = sor.u32 %s34, %s35
      %p37 = scmp.eq.s32.totalorder %s36, 0
      %s39 = sadd.s32 %s38, 1
      %s40 = scalar_select %p37, %s38, %s39
      %p43 = pneg %p37
      %p44 = scmp.eq.s32.totalorder %s14, 1
      %p45 = por %p43, %p44
      %p46 = scmp.ne.s32.totalorder %s38, %s41
      %p47 = scmp.eq.s32.totalorder %s14, 0
      %p48 = por %p46, %p47
      %p49 = scmp.ne.s32.totalorder %s38, %s41
      %p50 = scmp.eq.s32.totalorder %s19, 1
      %p51 = por %p49, %p50
      %p52 = scmp.ne.s32.totalorder %s41, %s42
      %p53 = scmp.eq.s32.totalorder %s19, 0
      %p54 = por %p52, %p53
      %p55 = scmp.ne.s32.totalorder %s41, %s42
      %p56 = scmp.eq.s32.totalorder %s20, 1
      %p57 = por %p55, %p56
      %p59 = scmp.ne.s32.totalorder %s42, %s58
      %p60 = scmp.eq.s32.totalorder %s20, 0
      %p61 = por %p59, %p60
      %s63 = sadd.s32 %s62, 1
      %p66 = scmp.eq.s32.totalorder %s14, 1
      %p67 = scmp.ne.s32.totalorder %s62, %s64
      %p68 = scmp.eq.s32.totalorder %s14, 0
      %p69 = por %p67, %p68
      %p70 = scmp.ne.s32.totalorder %s62, %s64
      %p71 = scmp.eq.s32.totalorder %s19, 1
      %p72 = por %p70, %p71
      %p73 = scmp.ne.s32.totalorder %s64, %s65
      %p74 = scmp.eq.s32.totalorder %s19, 0
      %p75 = por %p73, %p74
      %p76 = scmp.ne.s32.totalorder %s64, %s65
      %p77 = scmp.eq.s32.totalorder %s20, 1
      %p78 = por %p76, %p77
      %p80 = scmp.ne.s32.totalorder %s65, %s79
      %p81 = scmp.eq.s32.totalorder %s20, 0
      %p82 = por %p80, %p81
      %s84 = sadd.s32 %s83, 1
      %p87 = scmp.eq.s32.totalorder %s14, 1
      %p88 = scmp.ne.s32.totalorder %s83, %s85
      %p89 = scmp.eq.s32.totalorder %s14, 0
      %p90 = por %p88, %p89
      %p91 = scmp.ne.s32.totalorder %s83, %s85
      %p92 = scmp.eq.s32.totalorder %s19, 1
      %p93 = por %p91, %p92
      %p94 = scmp.ne.s32.totalorder %s85, %s86
      %p95 = scmp.eq.s32.totalorder %s19, 0
      %p96 = por %p94, %p95
      %p97 = scmp.ne.s32.totalorder %s85, %s86
      %p98 = scmp.eq.s32.totalorder %s20, 1
      %p99 = por %p97, %p98
      %p101 = scmp.ne.s32.totalorder %s86, %s100
      %p102 = scmp.eq.s32.totalorder %s20, 0
      %p103 = por %p101, %p102
      %s105 = sadd.s32 %s104, 1
      %p108 = scmp.eq.s32.totalorder %s14, 1
      %p109 = scmp.ne.s32.totalorder %s104, %s106
      %p110 = scmp.eq.s32.totalorder %s14, 0
      %p111 = por %p109, %p110
      %p112 = scmp.ne.s32.totalorder %s104, %s106
      %p113 = scmp.eq.s32.totalorder %s19, 1
      %p114 = por %p112, %p113
      %p115 = scmp.ne.s32.totalorder %s106, %s107
      %p116 = scmp.eq.s32.totalorder %s19, 0
      %p117 = por %p115, %p116
      %p118 = scmp.ne.s32.totalorder %s106, %s107
      %p119 = scmp.eq.s32.totalorder %s20, 1
      %p120 = por %p118, %p119
      %p122 = scmp.ne.s32.totalorder %s107, %s121
      %p123 = scmp.eq.s32.totalorder %s20, 0
      %p124 = por %p122, %p123
      %s126 = sadd.s32 %s125, 1
      %p129 = scmp.eq.s32.totalorder %s14, 1
      %p130 = scmp.ne.s32.totalorder %s125, %s127
      %p131 = scmp.eq.s32.totalorder %s14, 0
      %p132 = por %p130, %p131
      %p133 = scmp.ne.s32.totalorder %s125, %s127
      %p134 = scmp.eq.s32.totalorder %s19, 1
      %p135 = por %p133, %p134
      %p136 = scmp.ne.s32.totalorder %s127, %s128
      %p137 = scmp.eq.s32.totalorder %s19, 0
      %p138 = por %p136, %p137
      %p139 = scmp.ne.s32.totalorder %s127, %s128
      %p140 = scmp.eq.s32.totalorder %s20, 1
      %p141 = por %p139, %p140
      %p143 = scmp.ne.s32.totalorder %s128, %s142
      %p144 = scmp.eq.s32.totalorder %s20, 0
      %p145 = por %p143, %p144
      %s146 = ssub.s32 %s21, %s33
      %s147 = ssub.s32 %s22, %s29
      %s148 = sor.u32 %s146, %s147
      %p149 = scmp.eq.s32.totalorder %s148, 0
      %s151 = sadd.s32 %s150, 1
      %s152 = scalar_select %p149, %s150, %s151
      %p155 = pneg %p149
      %p156 = scmp.eq.s32.totalorder %s14, 1
      %p157 = por %p155, %p156
      %p158 = scmp.ne.s32.totalorder %s150, %s153
      %p159 = scmp.eq.s32.totalorder %s14, 0
      %p160 = por %p158, %p159
      %p161 = scmp.ne.s32.totalorder %s150, %s153
      %p162 = scmp.eq.s32.totalorder %s19, 1
      %p163 = por %p161, %p162
      %p164 = scmp.ne.s32.totalorder %s153, %s154
      %p165 = scmp.eq.s32.totalorder %s19, 0
      %p166 = por %p164, %p165
      %p167 = scmp.ne.s32.totalorder %s153, %s154
      %p168 = scmp.eq.s32.totalorder %s20, 1
      %p169 = por %p167, %p168
      %p171 = scmp.ne.s32.totalorder %s154, %s170
      %p172 = scmp.eq.s32.totalorder %s20, 0
      %p173 = por %p171, %p172
      %p174 = scmp.le.s32.totalorder 1, %s14
      %p175 = scmp.lt.s32.totalorder %s14, 3
      %p176 = pnand %p174, %p175
      %p177 = pneg %p176
      // Predicated region
      $region9: #{tpu_custom_call.1} parent=5 // pred_check
        _
      $region10: #{tpu_custom_call.1} parent=5 // pred_check_branch
        %179 = sbr.rel (%p176) target = $region12
      $region11: #{tpu_custom_call.1} parent=5 // pred_region
        %s180 = ssub.s32 %s14, 1
        // Predicated region
        $region13: #{tpu_custom_call.1} parent=11 // pred_check
          %p181 = pneg %p75
        $region14: #{tpu_custom_call.1} parent=11 // pred_check_branch
          %183 = sbr.rel (%p181) target = $region16
        $region15: #{tpu_custom_call.1} parent=11 // pred_region
          _
        $region16: #{tpu_custom_call.1} parent=11 // pred_fallthru
          _
        // Predicated region
        $region17: #{tpu_custom_call.1} parent=11 // pred_check
          %p184 = pneg %p96
        $region18: #{tpu_custom_call.1} parent=11 // pred_check_branch
          %186 = sbr.rel (%p184) target = $region20
        $region19: #{tpu_custom_call.1} parent=11 // pred_region
          _
        $region20: #{tpu_custom_call.1} parent=11 // pred_fallthru
          _
        // Predicated region
        $region21: #{tpu_custom_call.1} parent=11 // pred_check
          %p187 = pneg %p117
        $region22: #{tpu_custom_call.1} parent=11 // pred_check_branch
          %189 = sbr.rel (%p187) target = $region24
        $region23: #{tpu_custom_call.1} parent=11 // pred_region
          _
        $region24: #{tpu_custom_call.1} parent=11 // pred_fallthru
          _
        // Predicated region
        $region25: #{tpu_custom_call.1} parent=11 // pred_check
          %p190 = pneg %p138
        $region26: #{tpu_custom_call.1} parent=11 // pred_check_branch
          %192 = sbr.rel (%p190) target = $region28
        $region27: #{tpu_custom_call.1} parent=11 // pred_region
          _
        $region28: #{tpu_custom_call.1} parent=11 // pred_fallthru
          _
      $region12: #{tpu_custom_call.1} parent=5 // pred_fallthru
        _
      %p193 = scmp.lt.s32.totalorder %s14, 2
      // Predicated region
      $region29: #{tpu_custom_call.1} parent=5 // pred_check
        %p194 = pneg %p193
      $region30: #{tpu_custom_call.1} parent=5 // pred_check_branch
        %196 = sbr.rel (%p194) target = $region32
      $region31: #{tpu_custom_call.1} parent=5 // pred_region
        // Predicated region
        $region33: #{tpu_custom_call.1} parent=31 // pred_check
          %p197 = pneg %p48
        $region34: #{tpu_custom_call.1} parent=31 // pred_check_branch
          %199 = sbr.rel (%p197) target = $region36
        $region35: #{tpu_custom_call.1} parent=31 // pred_region
          %s200 = smul.u32 2, %s22
          %p201 = scmp.lt.s32.totalorder %s21, 1
          %s202 = scalar_select %p201, %s21, 1
          %p203 = scmp.lt.s32.totalorder %s200, 1
          %s204 = scalar_select %p203, %s200, 1
          %s205 = smul.addr %s202, 2
          %s206 = sadd.s32 %s204, %s205
          %s207 = smul.addr %s206, 8
          %s208 = scalar_lea.vmem %s0, %s207
          %s209 = smul.u32 2, %s22
        $region36: #{tpu_custom_call.1} parent=31 // pred_fallthru
          _
      $region32: #{tpu_custom_call.1} parent=5 // pred_fallthru
        _
      %p210 = scmp.le.s32.totalorder 1, %s14
      %p211 = scmp.lt.s32.totalorder %s14, 3
      %p212 = pnand %p210, %p211
      %p213 = pneg %p212
      // Predicated region
      $region37: #{tpu_custom_call.1} parent=5 // pred_check
        _
      $region38: #{tpu_custom_call.1} parent=5 // pred_check_branch
        %215 = sbr.rel (%p212) target = $region40
      $region39: #{tpu_custom_call.1} parent=5 // pred_region
        %s216 = ssub.s32 %s14, 1
        %s217 = smul.u32 2, %s24
        %p218 = scmp.lt.s32.totalorder %s23, 1
        %s219 = scalar_select %p218, %s23, 1
        %p220 = scmp.lt.s32.totalorder %s217, 1
        %s221 = scalar_select %p220, %s217, 1
        %s222 = smul.addr %s219, 2
        %s223 = sadd.s32 %s221, %s222
        %s224 = smul.addr %s223, 8
        %s225 = scalar_lea.vmem %s0, %s224
        %p226 = pneg %p54
        %p227 = pneg %p51
        %p228 = pneg %p75
        %p229 = pneg %p72
        %p230 = pneg %p96
        %p231 = pneg %p93
        %p232 = pneg %p117
        %p233 = pneg %p114
        %p234 = pneg %p138
        %p235 = pneg %p135
        %p236 = pneg %p166
        %p237 = pneg %p163
        %s238 = sand.u32 %s153, 1
        %s239 = scalar_lea.sflag [#allocation4], %s238
        %s240 = sand.u32 %s153, 1
        %s241 = smul.addr %s240, 4
        %s242 = scalar_lea.vmem [#allocation3], %s241
        %s243 = smul.u32 2, %s24
        %p244 = scmp.lt.s32.totalorder %s23, 1
        %s245 = scalar_select %p244, %s23, 1
        %p246 = scmp.lt.s32.totalorder %s243, 1
        %s247 = scalar_select %p246, %s243, 1
        %s248 = smul.addr %s245, 2
        %s249 = sadd.s32 %s247, %s248
        %s250 = smul.addr %s249, 8
        %s251 = scalar_lea.vmem %s0, %s250
        %s252 = smul.u32 2, %s24
        %v254 = vld [vmem:[%s1] sm:$0xff]
        %256 = vset.pattern.permute.xlu0 0
        %257 = vperm.xlu0 %256, %v254
        %v258 = vpop.permute.xlu0 %257
        %v260 = vld [vmem:[%s2] sm:$0xff]
        %262 = vset.pattern.permute.xlu0 0
        %263 = vperm.xlu0 %262, %v260
        %v264 = vpop.permute.xlu0 %263
        %v266 = vld [vmem:[%s4] sm:$0xf]
        %v267 = vld [vmem:[%s4 + $0x4] sm:$0xf]
        %v268 = vld [vmem:[%s4 + $0x8] sm:$0xf]
        %v269 = vld [vmem:[%s4 + $0xc] sm:$0xf]
        %v270 = vld [vmem:[%s251] sm:$0xff]
        %v271 = vmul.f32 %v270, %v258
        %v272 = vadd.f32 %v271, %v264
        %v273 = vmax.f32 %v272, 0.0
        %v274 = vpack.c.bf16 %v273, %v273
        %v279 = vunpack.c.l.b16 %v266
        %v280 = vunpack.c.l.b16 %v267
        %v281 = vunpack.c.l.b16 %v268
        %v282 = vunpack.c.l.b16 %v269
        %v283 = vpack.c.b16 %v280, %v279
        %v284 = vpack.c.b16 %v282, %v281
        %vm287 = vcmask 261120
        %v289 = vsel %vm287, %v274, 0
        %291 = vmatprep.subr.bf16.mxu0 0
        %292 = vmatpush1.bf16.msra.mxu0 %v283
        %293 = vmatprep.subr.bf16.mxu0 0
        %294 = vmatpush1.bf16.msra.mxu0 %v284
        %295 = vmatprep.subr.bf16.mxu0 0
        %296 = vmatpush1.bf16.msra.mxu0 0
        %297 = vmatprep.subr.bf16.mxu0 0
        %298 = vmatpush1.bf16.msra.mxu0 0
        %299 = vmatprep.subr.bf16.mxu0 0
        %300 = vmatpush1.bf16.msra.mxu0 0
        %301 = vmatprep.subr.bf16.mxu0 0
        %302 = vmatpush1.bf16.msra.mxu0 0
        %303 = vmatprep.subr.bf16.mxu0 0
        %304 = vmatpush1.bf16.msra.mxu0 0
        %305 = vmatprep.subr.bf16.mxu0 0
        %306 = vmatpush1.bf16.msra.mxu0 0
        %307 = vmatprep.subr.bf16.mxu0 0
        %308 = vmatpush1.bf16.msra.mxu0 0
        %309 = vmatprep.subr.bf16.mxu0 0
        %310 = vmatpush1.bf16.msra.mxu0 0
        %311 = vmatprep.subr.bf16.mxu0 0
        %312 = vmatpush1.bf16.msra.mxu0 0
        %313 = vmatprep.subr.bf16.mxu0 0
        %314 = vmatpush1.bf16.msra.mxu0 0
        %315 = vmatprep.subr.bf16.mxu0 0
        %316 = vmatpush1.bf16.msra.mxu0 0
        %317 = vmatprep.subr.bf16.mxu0 0
        %318 = vmatpush1.bf16.msra.mxu0 0
        %319 = vmatprep.subr.bf16.mxu0 0
        %320 = vmatpush1.bf16.msra.mxu0 0
        %321 = vmatprep.subr.bf16.mxu0 0
        %322 = vmatpush1.bf16.msra.mxu0 0
        %323 = vmatprep.mubr.bf16.mxu0 0
        %324 = vmatmul.mubr.bf16.gmra.mrb[0].mxu0 %v289
        %v325 = vpop.f32.mrb[0].mxu0
        %v326 = vadd.f32 0.0, %v325
        %v327 = vpop.f32.mrb[0].mxu0
        %v328 = vpop.f32.mrb[0].mxu0
        %v329 = vpop.f32.mrb[0].mxu0
        %330 = vdwg.mxu0
        %v331 = vpack.c.bf16 %v326, %v326
        %vm332 = vcmask 60416
        %333 = vst.msk [vmem:[#allocation2] sm:$0xf] %vm332, %v331
        %v334 = vld [vmem:[%s251] sm:$0xff]
        %v335 = vmul.f32 %v334, %v258
        %v336 = vadd.f32 %v335, %v264
        %v337 = vmax.f32 %v336, 0.0
        %v338 = vpack.c.bf16 %v337, %v337
        %340 = vrot.lane.b32.xlu0 %v338, 96
        %v341 = vpop.permute.xlu0 %340
        %v343 = vsel %vm287, %v341, 0
        %345 = vmatprep.subr.bf16.mxu0 0
        %346 = vmatpush1.bf16.msra.mxu0 %v283
        %347 = vmatprep.subr.bf16.mxu0 0
        %348 = vmatpush1.bf16.msra.mxu0 %v284
        %349 = vmatprep.subr.bf16.mxu0 0
        %350 = vmatpush1.bf16.msra.mxu0 0
        %351 = vmatprep.subr.bf16.mxu0 0
        %352 = vmatpush1.bf16.msra.mxu0 0
        %353 = vmatprep.subr.bf16.mxu0 0
        %354 = vmatpush1.bf16.msra.mxu0 0
        %355 = vmatprep.subr.bf16.mxu0 0
        %356 = vmatpush1.bf16.msra.mxu0 0
        %357 = vmatprep.subr.bf16.mxu0 0
        %358 = vmatpush1.bf16.msra.mxu0 0
        %359 = vmatprep.subr.bf16.mxu0 0
        %360 = vmatpush1.bf16.msra.mxu0 0
        %361 = vmatprep.subr.bf16.mxu0 0
        %362 = vmatpush1.bf16.msra.mxu0 0
        %363 = vmatprep.subr.bf16.mxu0 0
        %364 = vmatpush1.bf16.msra.mxu0 0
        %365 = vmatprep.subr.bf16.mxu0 0
        %366 = vmatpush1.bf16.msra.mxu0 0
        %367 = vmatprep.subr.bf16.mxu0 0
        %368 = vmatpush1.bf16.msra.mxu0 0
        %369 = vmatprep.subr.bf16.mxu0 0
        %370 = vmatpush1.bf16.msra.mxu0 0
        %371 = vmatprep.subr.bf16.mxu0 0
        %372 = vmatpush1.bf16.msra.mxu0 0
        %373 = vmatprep.subr.bf16.mxu0 0
        %374 = vmatpush1.bf16.msra.mxu0 0
        %375 = vmatprep.subr.bf16.mxu0 0
        %376 = vmatpush1.bf16.msra.mxu0 0
        %377 = vmatprep.mubr.bf16.mxu0 0
        %378 = vmatmul.mubr.bf16.gmra.mrb[0].mxu0 %v343
        %v379 = vpop.f32.mrb[0].mxu0
        %v380 = vadd.f32 0.0, %v379
        %v381 = vpop.f32.mrb[0].mxu0
        %v382 = vpop.f32.mrb[0].mxu0
        %v383 = vpop.f32.mrb[0].mxu0
        %384 = vdwg.mxu0
        %v385 = vpack.c.bf16 %v380, %v380
        %v387 = vunpack.c.l.b16 %v385
        %v388 = vpack.c.b16 %v387, %v387
        %389 = vrot.lane.b32.xlu0 %v388, 8
        %v390 = vpop.permute.xlu0 %389
        %vm392 = vcmask 126016
        %393 = vst.msk [vmem:[#allocation2] sm:$0xf] %vm392, %v390
        %v394 = vld [vmem:[%s251] sm:$0xff]
        %v395 = vmul.f32 %v394, %v258
        %v396 = vadd.f32 %v395, %v264
        %v397 = vmax.f32 %v396, 0.0
        %v398 = vpack.c.bf16 %v397, %v397
        %400 = vrot.lane.b32.xlu0 %v398, 64
        %v401 = vpop.permute.xlu0 %400
        %v403 = vsel %vm287, %v401, 0
        %405 = vmatprep.subr.bf16.mxu0 0
        %406 = vmatpush1.bf16.msra.mxu0 %v283
        %407 = vmatprep.subr.bf16.mxu0 0
        %408 = vmatpush1.bf16.msra.mxu0 %v284
        %409 = vmatprep.subr.bf16.mxu0 0
        %410 = vmatpush1.bf16.msra.mxu0 0
        %411 = vmatprep.subr.bf16.mxu0 0
        %412 = vmatpush1.bf16.msra.mxu0 0
        %413 = vmatprep.subr.bf16.mxu0 0
        %414 = vmatpush1.bf16.msra.mxu0 0
        %415 = vmatprep.subr.bf16.mxu0 0
        %416 = vmatpush1.bf16.msra.mxu0 0
        %417 = vmatprep.subr.bf16.mxu0 0
        %418 = vmatpush1.bf16.msra.mxu0 0
        %419 = vmatprep.subr.bf16.mxu0 0
        %420 = vmatpush1.bf16.msra.mxu0 0
        %421 = vmatprep.subr.bf16.mxu0 0
        %422 = vmatpush1.bf16.msra.mxu0 0
        %423 = vmatprep.subr.bf16.mxu0 0
        %424 = vmatpush1.bf16.msra.mxu0 0
        %425 = vmatprep.subr.bf16.mxu0 0
        %426 = vmatpush1.bf16.msra.mxu0 0
        %427 = vmatprep.subr.bf16.mxu0 0
        %428 = vmatpush1.bf16.msra.mxu0 0
        %429 = vmatprep.subr.bf16.mxu0 0
        %430 = vmatpush1.bf16.msra.mxu0 0
        %431 = vmatprep.subr.bf16.mxu0 0
        %432 = vmatpush1.bf16.msra.mxu0 0
        %433 = vmatprep.subr.bf16.mxu0 0
        %434 = vmatpush1.bf16.msra.mxu0 0
        %435 = vmatprep.subr.bf16.mxu0 0
        %436 = vmatpush1.bf16.msra.mxu0 0
        %437 = vmatprep.mubr.bf16.mxu0 0
        %438 = vmatmul.mubr.bf16.gmra.mrb[0].mxu0 %v403
        %v439 = vpop.f32.mrb[0].mxu0
        %v440 = vadd.f32 0.0, %v439
        %v441 = vpop.f32.mrb[0].mxu0
        %v442 = vpop.f32.mrb[0].mxu0
        %v443 = vpop.f32.mrb[0].mxu0
        %444 = vdwg.mxu0
        %v445 = vpack.c.bf16 %v440, %v440
        %v447 = vunpack.c.l.b16 %v445
        %v448 = vpack.c.b16 %v447, %v447
        %449 = vrot.lane.b32.xlu0 %v448, 16
        %v450 = vpop.permute.xlu0 %449
        %vm452 = vcmask 191616
        %453 = vst.msk [vmem:[#allocation2] sm:$0xf] %vm452, %v450
        %v454 = vld [vmem:[%s251] sm:$0xff]
        %v455 = vmul.f32 %v454, %v258
        %v456 = vadd.f32 %v455, %v264
        %v457 = vmax.f32 %v456, 0.0
        %v458 = vpack.c.bf16 %v457, %v457
        %460 = vrot.lane.b32.xlu0 %v458, 32
        %v461 = vpop.permute.xlu0 %460
        %v463 = vsel %vm287, %v461, 0
        %465 = vmatprep.subr.bf16.mxu0 0
        %466 = vmatpush1.bf16.msra.mxu0 %v283
        %467 = vmatprep.subr.bf16.mxu0 0
        %468 = vmatpush1.bf16.msra.mxu0 %v284
        %469 = vmatprep.subr.bf16.mxu0 0
        %470 = vmatpush1.bf16.msra.mxu0 0
        %471 = vmatprep.subr.bf16.mxu0 0
        %472 = vmatpush1.bf16.msra.mxu0 0
        %473 = vmatprep.subr.bf16.mxu0 0
        %474 = vmatpush1.bf16.msra.mxu0 0
        %475 = vmatprep.subr.bf16.mxu0 0
        %476 = vmatpush1.bf16.msra.mxu0 0
        %477 = vmatprep.subr.bf16.mxu0 0
        %478 = vmatpush1.bf16.msra.mxu0 0
        %479 = vmatprep.subr.bf16.mxu0 0
        %480 = vmatpush1.bf16.msra.mxu0 0
        %481 = vmatprep.subr.bf16.mxu0 0
        %482 = vmatpush1.bf16.msra.mxu0 0
        %483 = vmatprep.subr.bf16.mxu0 0
        %484 = vmatpush1.bf16.msra.mxu0 0
        %485 = vmatprep.subr.bf16.mxu0 0
        %486 = vmatpush1.bf16.msra.mxu0 0
        %487 = vmatprep.subr.bf16.mxu0 0
        %488 = vmatpush1.bf16.msra.mxu0 0
        %489 = vmatprep.subr.bf16.mxu0 0
        %490 = vmatpush1.bf16.msra.mxu0 0
        %491 = vmatprep.subr.bf16.mxu0 0
        %492 = vmatpush1.bf16.msra.mxu0 0
        %493 = vmatprep.subr.bf16.mxu0 0
        %494 = vmatpush1.bf16.msra.mxu0 0
        %495 = vmatprep.subr.bf16.mxu0 0
        %496 = vmatpush1.bf16.msra.mxu0 0
        %497 = vmatprep.mubr.bf16.mxu0 0
        %498 = vmatmul.mubr.bf16.gmra.mrb[0].mxu0 %v463
        %v499 = vpop.f32.mrb[0].mxu0
        %v500 = vadd.f32 0.0, %v499
        %v501 = vpop.f32.mrb[0].mxu0
        %v502 = vpop.f32.mrb[0].mxu0
        %v503 = vpop.f32.mrb[0].mxu0
        %504 = vdwg.mxu0
        %v505 = vpack.c.bf16 %v500, %v500
        %v507 = vunpack.c.l.b16 %v505
        %v508 = vpack.c.b16 %v507, %v507
        %509 = vrot.lane.b32.xlu0 %v508, 24
        %v510 = vpop.permute.xlu0 %509
        %vm512 = vcmask 257216
        %513 = vst.msk [vmem:[#allocation2] sm:$0xf] %vm512, %v510
        %v514 = vld [vmem:[%s251 + $0x8] sm:$0xff]
        %v515 = vmul.f32 %v514, %v258
        %v516 = vadd.f32 %v515, %v264
        %v517 = vmax.f32 %v516, 0.0
        %v518 = vpack.c.bf16 %v517, %v517
        %v520 = vsel %vm287, %v518, 0
        %522 = vmatprep.subr.bf16.mxu0 0
        %523 = vmatpush1.bf16.msra.mxu0 %v283
        %524 = vmatprep.subr.bf16.mxu0 0
        %525 = vmatpush1.bf16.msra.mxu0 %v284
        %526 = vmatprep.subr.bf16.mxu0 0
        %527 = vmatpush1.bf16.msra.mxu0 0
        %528 = vmatprep.subr.bf16.mxu0 0
        %529 = vmatpush1.bf16.msra.mxu0 0
        %530 = vmatprep.subr.bf16.mxu0 0
        %531 = vmatpush1.bf16.msra.mxu0 0
        %532 = vmatprep.subr.bf16.mxu0 0
        %533 = vmatpush1.bf16.msra.mxu0 0
        %534 = vmatprep.subr.bf16.mxu0 0
        %535 = vmatpush1.bf16.msra.mxu0 0
        %536 = vmatprep.subr.bf16.mxu0 0
        %537 = vmatpush1.bf16.msra.mxu0 0
        %538 = vmatprep.subr.bf16.mxu0 0
        %539 = vmatpush1.bf16.msra.mxu0 0
        %540 = vmatprep.subr.bf16.mxu0 0
        %541 = vmatpush1.bf16.msra.mxu0 0
        %542 = vmatprep.subr.bf16.mxu0 0
        %543 = vmatpush1.bf16.msra.mxu0 0
        %544 = vmatprep.subr.bf16.mxu0 0
        %545 = vmatpush1.bf16.msra.mxu0 0
        %546 = vmatprep.subr.bf16.mxu0 0
        %547 = vmatpush1.bf16.msra.mxu0 0
        %548 = vmatprep.subr.bf16.mxu0 0
        %549 = vmatpush1.bf16.msra.mxu0 0
        %550 = vmatprep.subr.bf16.mxu0 0
        %551 = vmatpush1.bf16.msra.mxu0 0
        %552 = vmatprep.subr.bf16.mxu0 0
        %553 = vmatpush1.bf16.msra.mxu0 0
        %554 = vmatprep.mubr.bf16.mxu0 0
        %555 = vmatmul.mubr.bf16.gmra.mrb[0].mxu0 %v520
        %v556 = vpop.f32.mrb[0].mxu0
        %v557 = vadd.f32 0.0, %v556
        %v558 = vpop.f32.mrb[0].mxu0
        %v559 = vpop.f32.mrb[0].mxu0
        %v560 = vpop.f32.mrb[0].mxu0
        %561 = vdwg.mxu0
        %v562 = vpack.c.bf16 %v557, %v557
        %v564 = vunpack.c.l.b16 %v562
        %v565 = vpack.c.b16 %v564, %v564
        %566 = vrot.lane.b32.xlu0 %v565, 32
        %v567 = vpop.permute.xlu0 %566
        %vm569 = vcmask 322816
        %570 = vst.msk [vmem:[#allocation2] sm:$0xf] %vm569, %v567
        %v571 = vld [vmem:[%s251 + $0x8] sm:$0xff]
        %v572 = vmul.f32 %v571, %v258
        %v573 = vadd.f32 %v572, %v264
        %v574 = vmax.f32 %v573, 0.0
        %v575 = vpack.c.bf16 %v574, %v574
        %577 = vrot.lane.b32.xlu0 %v575, 96
        %v578 = vpop.permute.xlu0 %577
        %v580 = vsel %vm287, %v578, 0
        %582 = vmatprep.subr.bf16.mxu0 0
        %583 = vmatpush1.bf16.msra.mxu0 %v283
        %584 = vmatprep.subr.bf16.mxu0 0
        %585 = vmatpush1.bf16.msra.mxu0 %v284
        %586 = vmatprep.subr.bf16.mxu0 0
        %587 = vmatpush1.bf16.msra.mxu0 0
        %588 = vmatprep.subr.bf16.mxu0 0
        %589 = vmatpush1.bf16.msra.mxu0 0
        %590 = vmatprep.subr.bf16.mxu0 0
        %591 = vmatpush1.bf16.msra.mxu0 0
        %592 = vmatprep.subr.bf16.mxu0 0
        %593 = vmatpush1.bf16.msra.mxu0 0
        %594 = vmatprep.subr.bf16.mxu0 0
        %595 = vmatpush1.bf16.msra.mxu0 0
        %596 = vmatprep.subr.bf16.mxu0 0
        %597 = vmatpush1.bf16.msra.mxu0 0
        %598 = vmatprep.subr.bf16.mxu0 0
        %599 = vmatpush1.bf16.msra.mxu0 0
        %600 = vmatprep.subr.bf16.mxu0 0
        %601 = vmatpush1.bf16.msra.mxu0 0
        %602 = vmatprep.subr.bf16.mxu0 0
        %603 = vmatpush1.bf16.msra.mxu0 0
        %604 = vmatprep.subr.bf16.mxu0 0
        %605 = vmatpush1.bf16.msra.mxu0 0
        %606 = vmatprep.subr.bf16.mxu0 0
        %607 = vmatpush1.bf16.msra.mxu0 0
        %608 = vmatprep.subr.bf16.mxu0 0
        %609 = vmatpush1.bf16.msra.mxu0 0
        %610 = vmatprep.subr.bf16.mxu0 0
        %611 = vmatpush1.bf16.msra.mxu0 0
        %612 = vmatprep.subr.bf16.mxu0 0
        %613 = vmatpush1.bf16.msra.mxu0 0
        %614 = vmatprep.mubr.bf16.mxu0 0
        %615 = vmatmul.mubr.bf16.gmra.mrb[0].mxu0 %v580
        %v616 = vpop.f32.mrb[0].mxu0
        %v617 = vadd.f32 0.0, %v616
        %v618 = vpop.f32.mrb[0].mxu0
        %v619 = vpop.f32.mrb[0].mxu0
        %v620 = vpop.f32.mrb[0].mxu0
        %621 = vdwg.mxu0
        %v622 = vpack.c.bf16 %v617, %v617
        %v624 = vunpack.c.l.b16 %v622
        %v625 = vpack.c.b16 %v624, %v624
        %626 = vrot.lane.b32.xlu0 %v625, 40
        %v627 = vpop.permute.xlu0 %626
        %vm629 = vcmask 388416
        %630 = vst.msk [vmem:[#allocation2] sm:$0xf] %vm629, %v627
        %v631 = vld [vmem:[%s251 + $0x8] sm:$0xff]
        %v632 = vmul.f32 %v631, %v258
        %v633 = vadd.f32 %v632, %v264
        %v634 = vmax.f32 %v633, 0.0
        %v635 = vpack.c.bf16 %v634, %v634
        %637 = vrot.lane.b32.xlu0 %v635, 64
        %v638 = vpop.permute.xlu0 %637
        %v640 = vsel %vm287, %v638, 0
        %642 = vmatprep.subr.bf16.mxu0 0
        %643 = vmatpush1.bf16.msra.mxu0 %v283
        %644 = vmatprep.subr.bf16.mxu0 0
        %645 = vmatpush1.bf16.msra.mxu0 %v284
        %646 = vmatprep.subr.bf16.mxu0 0
        %647 = vmatpush1.bf16.msra.mxu0 0
        %648 = vmatprep.subr.bf16.mxu0 0
        %649 = vmatpush1.bf16.msra.mxu0 0
        %650 = vmatprep.subr.bf16.mxu0 0
        %651 = vmatpush1.bf16.msra.mxu0 0
        %652 = vmatprep.subr.bf16.mxu0 0
        %653 = vmatpush1.bf16.msra.mxu0 0
        %654 = vmatprep.subr.bf16.mxu0 0
        %655 = vmatpush1.bf16.msra.mxu0 0
        %656 = vmatprep.subr.bf16.mxu0 0
        %657 = vmatpush1.bf16.msra.mxu0 0
        %658 = vmatprep.subr.bf16.mxu0 0
        %659 = vmatpush1.bf16.msra.mxu0 0
        %660 = vmatprep.subr.bf16.mxu0 0
        %661 = vmatpush1.bf16.msra.mxu0 0
        %662 = vmatprep.subr.bf16.mxu0 0
        %663 = vmatpush1.bf16.msra.mxu0 0
        %664 = vmatprep.subr.bf16.mxu0 0
        %665 = vmatpush1.bf16.msra.mxu0 0
        %666 = vmatprep.subr.bf16.mxu0 0
        %667 = vmatpush1.bf16.msra.mxu0 0
        %668 = vmatprep.subr.bf16.mxu0 0
        %669 = vmatpush1.bf16.msra.mxu0 0
        %670 = vmatprep.subr.bf16.mxu0 0
        %671 = vmatpush1.bf16.msra.mxu0 0
        %672 = vmatprep.subr.bf16.mxu0 0
        %673 = vmatpush1.bf16.msra.mxu0 0
        %674 = vmatprep.mubr.bf16.mxu0 0
        %675 = vmatmul.mubr.bf16.gmra.mrb[0].mxu0 %v640
        %v676 = vpop.f32.mrb[0].mxu0
        %v677 = vadd.f32 0.0, %v676
        %v678 = vpop.f32.mrb[0].mxu0
        %v679 = vpop.f32.mrb[0].mxu0
        %v680 = vpop.f32.mrb[0].mxu0
        %681 = vdwg.mxu0
        %v682 = vpack.c.bf16 %v677, %v677
        %v684 = vunpack.c.l.b16 %v682
        %v685 = vpack.c.b16 %v684, %v684
        %686 = vrot.lane.b32.xlu0 %v685, 48
        %v687 = vpop.permute.xlu0 %686
        %vm689 = vcmask 454016
        %690 = vst.msk [vmem:[#allocation2] sm:$0xf] %vm689, %v687
        %v691 = vld [vmem:[%s251 + $0x8] sm:$0xff]
        %v692 = vmul.f32 %v691, %v258
        %v693 = vadd.f32 %v692, %v264
        %v694 = vmax.f32 %v693, 0.0
        %v695 = vpack.c.bf16 %v694, %v694
        %697 = vrot.lane.b32.xlu0 %v695, 32
        %v698 = vpop.permute.xlu0 %697
        %v700 = vsel %vm287, %v698, 0
        %702 = vmatprep.subr.bf16.mxu0 0
        %703 = vmatpush1.bf16.msra.mxu0 %v283
        %704 = vmatprep.subr.bf16.mxu0 0
        %705 = vmatpush1.bf16.msra.mxu0 %v284
        %706 = vmatprep.subr.bf16.mxu0 0
        %707 = vmatpush1.bf16.msra.mxu0 0
        %708 = vmatprep.subr.bf16.mxu0 0
        %709 = vmatpush1.bf16.msra.mxu0 0
        %710 = vmatprep.subr.bf16.mxu0 0
        %711 = vmatpush1.bf16.msra.mxu0 0
        %712 = vmatprep.subr.bf16.mxu0 0
        %713 = vmatpush1.bf16.msra.mxu0 0
        %714 = vmatprep.subr.bf16.mxu0 0
        %715 = vmatpush1.bf16.msra.mxu0 0
        %716 = vmatprep.subr.bf16.mxu0 0
        %717 = vmatpush1.bf16.msra.mxu0 0
        %718 = vmatprep.subr.bf16.mxu0 0
        %719 = vmatpush1.bf16.msra.mxu0 0
        %720 = vmatprep.subr.bf16.mxu0 0
        %721 = vmatpush1.bf16.msra.mxu0 0
        %722 = vmatprep.subr.bf16.mxu0 0
        %723 = vmatpush1.bf16.msra.mxu0 0
        %724 = vmatprep.subr.bf16.mxu0 0
        %725 = vmatpush1.bf16.msra.mxu0 0
        %726 = vmatprep.subr.bf16.mxu0 0
        %727 = vmatpush1.bf16.msra.mxu0 0
        %728 = vmatprep.subr.bf16.mxu0 0
        %729 = vmatpush1.bf16.msra.mxu0 0
        %730 = vmatprep.subr.bf16.mxu0 0
        %731 = vmatpush1.bf16.msra.mxu0 0
        %732 = vmatprep.subr.bf16.mxu0 0
        %733 = vmatpush1.bf16.msra.mxu0 0
        %734 = vmatprep.mubr.bf16.mxu0 0
        %735 = vmatmul.mubr.bf16.gmra.mrb[0].mxu0 %v700
        %v736 = vpop.f32.mrb[0].mxu0
        %v737 = vadd.f32 0.0, %v736
        %v738 = vpop.f32.mrb[0].mxu0
        %v739 = vpop.f32.mrb[0].mxu0
        %v740 = vpop.f32.mrb[0].mxu0
        %741 = vdwg.mxu0
        %v742 = vpack.c.bf16 %v737, %v737
        %v744 = vunpack.c.l.b16 %v742
        %v745 = vpack.c.b16 %v744, %v744
        %746 = vrot.lane.b32.xlu0 %v745, 56
        %v747 = vpop.permute.xlu0 %746
        %vm749 = vcmask 519616
        %750 = vst.msk [vmem:[#allocation2] sm:$0xf] %vm749, %v747
        %v751 = vld [vmem:[%s3] sm:$0x3]
        %v752 = vld [vmem:[#allocation2] sm:$0xf]
        %vm753 = vcmask 64512
        %v755 = vsel %vm753, %v751, 0
        %vm757 = vcmask 1043456
        %v759 = vsel %vm757, %v752, 0
        %761 = vmatprep.subr.bf16.mxu0 0
        %762 = vmatpush1.bf16.msra.mxu0 %v759
        %763 = vmatprep.subr.bf16.mxu0 0
        %764 = vmatpush1.bf16.msra.mxu0 0
        %765 = vmatprep.subr.bf16.mxu0 0
        %766 = vmatpush1.bf16.msra.mxu0 0
        %767 = vmatprep.subr.bf16.mxu0 0
        %768 = vmatpush1.bf16.msra.mxu0 0
        %769 = vmatprep.subr.bf16.mxu0 0
        %770 = vmatpush1.bf16.msra.mxu0 0
        %771 = vmatprep.subr.bf16.mxu0 0
        %772 = vmatpush1.bf16.msra.mxu0 0
        %773 = vmatprep.subr.bf16.mxu0 0
        %774 = vmatpush1.bf16.msra.mxu0 0
        %775 = vmatprep.subr.bf16.mxu0 0
        %776 = vmatpush1.bf16.msra.mxu0 0
        %777 = vmatprep.subr.bf16.mxu0 0
        %778 = vmatpush1.bf16.msra.mxu0 0
        %779 = vmatprep.subr.bf16.mxu0 0
        %780 = vmatpush1.bf16.msra.mxu0 0
        %781 = vmatprep.subr.bf16.mxu0 0
        %782 = vmatpush1.bf16.msra.mxu0 0
        %783 = vmatprep.subr.bf16.mxu0 0
        %784 = vmatpush1.bf16.msra.mxu0 0
        %785 = vmatprep.subr.bf16.mxu0 0
        %786 = vmatpush1.bf16.msra.mxu0 0
        %787 = vmatprep.subr.bf16.mxu0 0
        %788 = vmatpush1.bf16.msra.mxu0 0
        %789 = vmatprep.subr.bf16.mxu0 0
        %790 = vmatpush1.bf16.msra.mxu0 0
        %791 = vmatprep.subr.bf16.mxu0 0
        %792 = vmatpush1.bf16.msra.mxu0 0
        %793 = vmatprep.mubr.bf16.mxu0 0
        %794 = vmatmul.mubr.bf16.gmra.mrb[0].mxu0 %v755
        %v795 = vpop.f32.mrb[0].mxu0
        %v796 = vadd.f32 0.0, %v795
        %v797 = vpop.f32.mrb[0].mxu0
        %v798 = vpop.f32.mrb[0].mxu0
        %v799 = vpop.f32.mrb[0].mxu0
        %800 = vdwg.mxu0
        %vm801 = vcmask 519168
        %802 = vst.msk [vmem:[%s242] sm:$0xf] %vm801, %v796
        %s803 = sand.u32 %s153, 1
        %s804 = scalar_lea.sflag [#allocation4], %s803
        %s805 = sand.u32 %s153, 1
        %s806 = smul.addr %s805, 4
        %s807 = scalar_lea.vmem [#allocation3], %s806
        // Predicated region
        $region41: #{tpu_custom_call.1} parent=39 // pred_check
          %p808 = pneg %p163
        $region42: #{tpu_custom_call.1} parent=39 // pred_check_branch
          %810 = sbr.rel (%p808) target = $region44
        $region43: #{tpu_custom_call.1} parent=39 // pred_region
          %s812 = ssub.s32 64, 64
          %813 = vsyncadd %s804, %s812
          %s814 = sadd.s32 %s24, %s23
          %s815 = smul.addr %s814, 64
          %s816 = scalar_lea.hbm %s5, %s815
          %s818 = sshll.u32 %s807, 4
          %s819 = int_to_ptr.vmem [resolvable:$true] %s818
          %821 = dma.vmem_to_hbm [thread:$0]  %s819, 64, %s816, %s804
        $region44: #{tpu_custom_call.1} parent=39 // pred_fallthru
          _
      $region40: #{tpu_custom_call.1} parent=5 // pred_fallthru
        _
      %p822 = scmp.le.s32.totalorder 2, %s14
      // Predicated region
      $region45: #{tpu_custom_call.1} parent=5 // pred_check
        %p823 = pneg %p822
      $region46: #{tpu_custom_call.1} parent=5 // pred_check_branch
        %825 = sbr.rel (%p823) target = $region48
      $region47: #{tpu_custom_call.1} parent=5 // pred_region
        %s826 = ssub.s32 %s14, 2
        // Predicated region
        $region49: #{tpu_custom_call.1} parent=47 // pred_check
          %p827 = pneg %p169
        $region50: #{tpu_custom_call.1} parent=47 // pred_check_branch
          %829 = sbr.rel (%p827) target = $region52
        $region51: #{tpu_custom_call.1} parent=47 // pred_region
          %s830 = sand.u32 %s154, 1
          %s831 = scalar_lea.sflag [#allocation4], %s830
          %s832 = sand.u32 %s154, 1
          %s833 = smul.addr %s832, 4
          %s834 = scalar_lea.vmem [#allocation3], %s833
          %835 = dma.done %s831, 64
        $region52: #{tpu_custom_call.1} parent=47 // pred_fallthru
          _
      $region48: #{tpu_custom_call.1} parent=5 // pred_fallthru
        _
    $region6: #{tpu_custom_call.1} parent=1 // loop_footer
      %s18 = sadd.s32 1, %s14
    $region7: #{tpu_custom_call.1} parent=1 // loop_footer_branch
      %13 = sbr.rel target = $region3
    $region8: #{tpu_custom_call.1} parent=1 // loop_exit
      _
    %836 = vsyncpa [#allocation4], 1
    %s837 = scalar_lea.sflag [#allocation4], 1
    %838 = vsyncpa %s837, 1

</llo_original>
